<compile_context>
chip_gen: v7x
topology: tpu7x:2x2x1
jax: 0.10.0
libtpu: 0.0.40
codegen_flags: <defaults>
</compile_context>

<pallas_src>
import functools

import jax
import jax.numpy as jnp
from jax.experimental import pallas as pl
from jax.experimental.pallas import tpu as pltpu


def _round_up(x, m):
    return ((x + m - 1) // m) * m


# ---------------------------------------------------------------------------
# Pallas kernel: fused conv1+bn1+prelu1+conv2+bn2+residual+prelu2+maxpool(3)
# ---------------------------------------------------------------------------
def _resnet_block_kernel(x_ref, w1_ref, w2_ref, p_ref, o_ref):
    # x_ref : (3, tm, Cp)  three time phases of one row tile, channel-last
    # w1/w2 : (Cp, Cp)     BN-folded (x @ W) weights (resident across grid)
    # p_ref : (4, Cp)      rows: shift1, shift2, alpha1, alpha2
    # o_ref : (tm, Cp)     max-pooled output tile
    tm = o_ref.shape[0]
    cp = o_ref.shape[1]

    p = p_ref[...]
    shift1 = p[0:1, :]
    shift2 = p[1:2, :]
    a1 = p[2:3, :]
    a2 = p[3:4, :]

    # Merge the 3 phases into a single (3*tm, Cp) operand: one big MXU matmul
    # per layer.  tm % 8 == 0 and Cp % 128 == 0, so the reshape is tile-aligned.
    x = x_ref[...].reshape(3 * tm, cp)

    h = jnp.dot(x, w1_ref[...], preferred_element_type=jnp.float32) + shift1
    h = jnp.where(h > 0, h, a1 * h)                            # PReLU 1
    h = jnp.dot(h, w2_ref[...], preferred_element_type=jnp.float32) + shift2
    h = h + x                                                  # residual
    y = jnp.where(h > 0, h, a2 * h)                            # PReLU 2

    # MaxPool1d(3): elementwise max over the 3 phases (sublane-aligned slices).
    y0 = y[0 * tm:1 * tm, :]
    y1 = y[1 * tm:2 * tm, :]
    y2 = y[2 * tm:3 * tm, :]
    o_ref[...] = jnp.maximum(jnp.maximum(y0, y1), y2).astype(o_ref.dtype)


def _fused_block_pallas(x_in, w1, w2, p, tm):
    """x_in: (3, Mp, Cp), w1/w2: (Cp, Cp), p: (4, Cp) -> (Mp, Cp)."""
    _, Mp, Cp = x_in.shape
    grid = (Mp // tm,)
    flops = 2 * 2 * (3 * Mp) * Cp * Cp                         # two matmuls
    bytes_accessed = (x_in.size + w1.size + w2.size + p.size + Mp * Cp) * 4
    return pl.pallas_call(
        _resnet_block_kernel,
        out_shape=jax.ShapeDtypeStruct((Mp, Cp), jnp.float32),
        grid=grid,
        in_specs=[
            pl.BlockSpec((3, tm, Cp), lambda i: (0, i, 0)),
            pl.BlockSpec((Cp, Cp), lambda i: (0, 0)),          # resident weights
            pl.BlockSpec((Cp, Cp), lambda i: (0, 0)),
            pl.BlockSpec((4, Cp), lambda i: (0, 0)),           # resident params
        ],
        out_specs=pl.BlockSpec((tm, Cp), lambda i: (i, 0)),
        compiler_params=pltpu.CompilerParams(
            dimension_semantics=("parallel",)),
        cost_estimate=pl.CostEstimate(
            flops=int(flops), transcendentals=0,
            bytes_accessed=int(bytes_accessed)),
    )(x_in, w1, w2, p)


# ---------------------------------------------------------------------------
# BN folding + channel padding (wrapper-side, cheap per-channel math)
# ---------------------------------------------------------------------------
def _fold_and_pad(params, C, Cp, eps=1e-5):
    s1 = params["gamma1"] / jnp.sqrt(params["var1"] + eps)          # (C,)
    w1_eff = params["w1"][:, :, 0].T * s1[None, :]                  # (Cin, Cout)
    shift1 = (params["b1"] - params["mean1"]) * s1 + params["beta1"]
    s2 = params["gamma2"] / jnp.sqrt(params["var2"] + eps)
    w2_eff = params["w2"][:, :, 0].T * s2[None, :]
    shift2 = (params["b2"] - params["mean2"]) * s2 + params["beta2"]

    pad_c = Cp - C
    w1p = jnp.pad(w1_eff, ((0, pad_c), (0, pad_c)))
    w2p = jnp.pad(w2_eff, ((0, pad_c), (0, pad_c)))
    p = jnp.stack([
        jnp.pad(shift1, (0, pad_c)),
        jnp.pad(shift2, (0, pad_c)),
        jnp.full((Cp,), params["alpha1"], jnp.float32),
        jnp.full((Cp,), params["alpha2"], jnp.float32),
    ])                                                              # (4, Cp)
    return w1p.astype(jnp.float32), w2p.astype(jnp.float32), p.astype(jnp.float32)


def _choose_tm(M, Cp, tm_max):
    # Keep the x block (3 * tm * Cp * f32) around <= ~0.75 MiB so the
    # double-buffered footprint + temporaries fit the v5e 16 MiB scoped default.
    cap = max(64, (65536 // Cp) // 8 * 8 * 1)   # Cp=128 -> 512, Cp=256 -> 256
    tm = min(tm_max, cap)
    if M < tm:
        tm = _round_up(max(M, 8), 8)
    return tm


# ---------------------------------------------------------------------------
# Forward wrapper (layout plumbing: NCT <-> phase-split channel-last)
# ---------------------------------------------------------------------------
def resnet_block_forward(x, params, *, tm_max=512):
    """x: (B, C, T) float32 -> (B, C, T // 3) float32 (same as PyTorch module)."""
    B, C, T = x.shape
    To = T // 3                       # MaxPool1d(3): floor, stride 3
    M = B * To
    Cp = _round_up(C, 128)            # lane-dense channels

    w1p, w2p, p = _fold_and_pad(params, C, Cp)

    # Phase-split + channel-last: x[b, c, 3j+r] -> xcl[r, b*To + j, c]
    xt = x[:, :, : 3 * To].reshape(B, C, To, 3)
    xcl = jnp.transpose(xt, (3, 0, 2, 1)).reshape(3, M, C)

    tm = _choose_tm(M, Cp, tm_max)
    Mp = _round_up(M, tm)
    x_in = jnp.pad(xcl, ((0, 0), (0, Mp - M), (0, Cp - C)))

    out = _fused_block_pallas(x_in, w1p, w2p, p, tm)   # (Mp, Cp)
    out = out[:M, :C].reshape(B, To, C)
    return jnp.transpose(out, (0, 2, 1))               # (B, C, To)  (NCT)


# ---------------------------------------------------------------------------
# Deterministic parameter init (shapes follow nn.Conv1d / BatchNorm1d / PReLU)
# ---------------------------------------------------------------------------
def init_params(key, C):
    ks = jax.random.split(key, 12)
    bound = 1.0 / jnp.sqrt(jnp.asarray(C, jnp.float32))

    def u(k, shape):
        return jax.random.uniform(k, shape, jnp.float32, -bound, bound)

    return {
        "w1": u(ks[0], (C, C, 1)), "b1": u(ks[1], (C,)),
        "w2": u(ks[2], (C, C, 1)), "b2": u(ks[3], (C,)),
        "gamma1": 1.0 + 0.1 * jax.random.normal(ks[4], (C,), jnp.float32),
        "beta1": 0.1 * jax.random.normal(ks[5], (C,), jnp.float32),
        "mean1": 0.1 * jax.random.normal(ks[6], (C,), jnp.float32),
        "var1": jax.random.uniform(ks[7], (C,), jnp.float32, 0.5, 1.5),
        "gamma2": 1.0 + 0.1 * jax.random.normal(ks[8], (C,), jnp.float32),
        "beta2": 0.1 * jax.random.normal(ks[9], (C,), jnp.float32),
        "mean2": 0.1 * jax.random.normal(ks[10], (C,), jnp.float32),
        "var2": jax.random.uniform(ks[11], (C,), jnp.float32, 0.5, 1.5),
        "alpha1": jnp.asarray(0.25, jnp.float32),   # PReLU default init
        "alpha2": jnp.asarray(0.25, jnp.float32),
    }


# ---------------------------------------------------------------------------
# Pure-JAX reference mirroring the PyTorch module (eval-mode BatchNorm)
# ---------------------------------------------------------------------------
def _reference_forward(x, params, eps=1e-5):
    def conv1d_k1(h, w, b):
        return jnp.einsum("oi,bit->bot", w[:, :, 0], h) + b[None, :, None]

    def batchnorm(h, gamma, beta, mean, var):
        inv = gamma / jnp.sqrt(var + eps)
        return (h - mean[None, :, None]) * inv[None, :, None] + beta[None, :, None]

    def prelu(h, a):
        return jnp.where(h > 0, h, a * h)

    out = conv1d_k1(x, params["w1"], params["b1"])
    out = batchnorm(out, params["gamma1"], params["beta1"],
                    params["mean1"], params["var1"])
    out = prelu(out, params["alpha1"])
    out = conv1d_k1(out, params["w2"], params["b2"])
    out = batchnorm(out, params["gamma2"], params["beta2"],
                    params["mean2"], params["var2"])
    out = out + x
    out = prelu(out, params["alpha2"])
    B, C, T = out.shape
    To = T // 3
    return out[:, :, : 3 * To].reshape(B, C, To, 3).max(axis=-1)


if __name__ == "__main__":
    # Small shapes: batch=2, channels=32, seq=96 -> pooled seq=32.
    B, C, T = 2, 32, 96

    key = jax.random.PRNGKey(0)
    kx, kp = jax.random.split(key)
    x = jax.random.normal(kx, (B, C, T), jnp.float32)
    params = init_params(kp, C)

    fwd = jax.jit(functools.partial(resnet_block_forward, tm_max=512))
    out = fwd(x, params)
    jax.block_until_ready(out)

    ref = _reference_forward(x, params)
    assert out.shape == ref.shape == (B, C, T // 3), (out.shape, ref.shape)
    assert jnp.allclose(out, ref, atol=1e-4, rtol=1e-4), "mismatch vs reference"

    print("KERNEL_OK")
</pallas_src>

<mosaic_0001>
module attributes {stable_mosaic.version = 11 : i64} {
  func.func @_resnet_block_kernel(%arg0: i32, %arg1: memref<3x64x128xf32, #tpu.memory_space<vmem>>, %arg2: memref<128x128xf32, #tpu.memory_space<vmem>>, %arg3: memref<128x128xf32, #tpu.memory_space<vmem>>, %arg4: memref<4x128xf32, #tpu.memory_space<vmem>>, %arg5: memref<64x128xf32, #tpu.memory_space<vmem>>) attributes {dimension_semantics = [#tpu.dimension_semantics<parallel>], iteration_bounds = array<i64: 1>, scalar_prefetch = 0 : i64, scratch_operands = 0 : i64, tpu.core_type = #tpu.core_type<tc>, window_params = [{transform_indices = @transform_0, window_bounds = array<i64: 3, 64, 128>}, {pipeline_mode = #tpu.pipeline_mode<synchronous>, transform_indices = @transform_1, window_bounds = array<i64: 128, 128>}, {pipeline_mode = #tpu.pipeline_mode<synchronous>, transform_indices = @transform_2, window_bounds = array<i64: 128, 128>}, {pipeline_mode = #tpu.pipeline_mode<synchronous>, transform_indices = @transform_3, window_bounds = array<i64: 4, 128>}, {transform_indices = @transform_4, window_bounds = array<i64: 64, 128>}]} {
    %c0 = arith.constant 0 : index
    %c0_0 = arith.constant 0 : index
    %0 = vector.load %arg4[%c0, %c0_0] : memref<4x128xf32, #tpu.memory_space<vmem>>, vector<4x128xf32>
    %1 = vector.extract_strided_slice %0 {offsets = [0, 0], sizes = [1, 128], strides = [1, 1]} : vector<4x128xf32> to vector<1x128xf32>
    %2 = vector.extract_strided_slice %0 {offsets = [1, 0], sizes = [1, 128], strides = [1, 1]} : vector<4x128xf32> to vector<1x128xf32>
    %3 = vector.extract_strided_slice %0 {offsets = [2, 0], sizes = [1, 128], strides = [1, 1]} : vector<4x128xf32> to vector<1x128xf32>
    %4 = vector.extract_strided_slice %0 {offsets = [3, 0], sizes = [1, 128], strides = [1, 1]} : vector<4x128xf32> to vector<1x128xf32>
    %c0_1 = arith.constant 0 : index
    %c0_2 = arith.constant 0 : index
    %c0_3 = arith.constant 0 : index
    %5 = vector.load %arg1[%c0_1, %c0_2, %c0_3] : memref<3x64x128xf32, #tpu.memory_space<vmem>>, vector<3x64x128xf32>
    %6 = vector.shape_cast %5 : vector<3x64x128xf32> to vector<192x128xf32>
    %c0_4 = arith.constant 0 : index
    %c0_5 = arith.constant 0 : index
    %7 = vector.load %arg2[%c0_4, %c0_5] : memref<128x128xf32, #tpu.memory_space<vmem>>, vector<128x128xf32>
    %cst = arith.constant dense<0.000000e+00> : vector<192x128xf32>
    %8 = tpu.matmul %6, %7, %cst {dimension_numbers = #tpu.dot_dimension_numbers<[1], [0], [0], [1], [0, 0, 1, 1], [], []>} : vector<192x128xf32>, vector<128x128xf32>, vector<192x128xf32> -> vector<192x128xf32>
    %9 = vector.broadcast %1 : vector<1x128xf32> to vector<192x128xf32>
    %10 = arith.addf %8, %9 : vector<192x128xf32>
    %cst_6 = arith.constant 0.000000e+00 : f32
    %11 = vector.broadcast %cst_6 : f32 to vector<192x128xf32>
    %12 = arith.cmpf ogt, %10, %11 : vector<192x128xf32>
    %13 = vector.broadcast %3 : vector<1x128xf32> to vector<192x128xf32>
    %14 = arith.mulf %13, %10 : vector<192x128xf32>
    %15 = arith.select %12, %10, %14 : vector<192x128xi1>, vector<192x128xf32>
    %c0_7 = arith.constant 0 : index
    %c0_8 = arith.constant 0 : index
    %16 = vector.load %arg3[%c0_7, %c0_8] : memref<128x128xf32, #tpu.memory_space<vmem>>, vector<128x128xf32>
    %cst_9 = arith.constant dense<0.000000e+00> : vector<192x128xf32>
    %17 = tpu.matmul %15, %16, %cst_9 {dimension_numbers = #tpu.dot_dimension_numbers<[1], [0], [0], [1], [0, 0, 1, 1], [], []>} : vector<192x128xf32>, vector<128x128xf32>, vector<192x128xf32> -> vector<192x128xf32>
    %18 = vector.broadcast %2 : vector<1x128xf32> to vector<192x128xf32>
    %19 = arith.addf %17, %18 : vector<192x128xf32>
    %20 = arith.addf %19, %6 : vector<192x128xf32>
    %cst_10 = arith.constant 0.000000e+00 : f32
    %21 = vector.broadcast %cst_10 : f32 to vector<192x128xf32>
    %22 = arith.cmpf ogt, %20, %21 : vector<192x128xf32>
    %23 = vector.broadcast %4 : vector<1x128xf32> to vector<192x128xf32>
    %24 = arith.mulf %23, %20 : vector<192x128xf32>
    %25 = arith.select %22, %20, %24 : vector<192x128xi1>, vector<192x128xf32>
    %26 = vector.extract_strided_slice %25 {offsets = [0, 0], sizes = [64, 128], strides = [1, 1]} : vector<192x128xf32> to vector<64x128xf32>
    %27 = vector.extract_strided_slice %25 {offsets = [64, 0], sizes = [64, 128], strides = [1, 1]} : vector<192x128xf32> to vector<64x128xf32>
    %28 = vector.extract_strided_slice %25 {offsets = [128, 0], sizes = [64, 128], strides = [1, 1]} : vector<192x128xf32> to vector<64x128xf32>
    %29 = arith.maximumf %26, %27 : vector<64x128xf32>
    %30 = arith.maximumf %29, %28 : vector<64x128xf32>
    %c0_11 = arith.constant 0 : index
    %c0_12 = arith.constant 0 : index
    %31 = vector.load %arg5[%c0_11, %c0_12] : memref<64x128xf32, #tpu.memory_space<vmem>>, vector<64x128xf32>
    tpu.vector_store %arg5[%c0_11, %c0_12], %30 {strides = array<i32>} : memref<64x128xf32, #tpu.memory_space<vmem>>, vector<64x128xf32>,
    return
  }
  func.func @transform_0(%arg0: i32) -> (i32, i32, i32) {
    %c0_i32 = arith.constant 0 : i32
    %c0_i32_0 = arith.constant 0 : i32
    %c0_i32_1 = arith.constant 0 : i32
    return %c0_i32, %arg0, %c0_i32_0 : i32, i32, i32
  }
  func.func @transform_1(%arg0: i32) -> (i32, i32) {
    %c0_i32 = arith.constant 0 : i32
    %c0_i32_0 = arith.constant 0 : i32
    %c0_i32_1 = arith.constant 0 : i32
    return %c0_i32, %c0_i32_0 : i32, i32
  }
  func.func @transform_2(%arg0: i32) -> (i32, i32) {
    %c0_i32 = arith.constant 0 : i32
    %c0_i32_0 = arith.constant 0 : i32
    %c0_i32_1 = arith.constant 0 : i32
    return %c0_i32, %c0_i32_0 : i32, i32
  }
  func.func @transform_3(%arg0: i32) -> (i32, i32) {
    %c0_i32 = arith.constant 0 : i32
    %c0_i32_0 = arith.constant 0 : i32
    %c0_i32_1 = arith.constant 0 : i32
    return %c0_i32, %c0_i32_0 : i32, i32
  }
  func.func @transform_4(%arg0: i32) -> (i32, i32) {
    %c0_i32 = arith.constant 0 : i32
    %c0_i32_0 = arith.constant 0 : i32
    return %arg0, %c0_i32 : i32, i32
  }
}

</mosaic_0001>

<llo_original>
// kernel: resnet_block_forward.1
$region0: #{resnet_block_forward.1}
  #allocation0 [shape = 'u32[]', space=smem, size = 0x4, offset = 0x4, fixed_abs, tag = 'smem constant byte address 0x4 - core index']
  #allocation1 [shape = 'u32[144,128]{1,0:T(1,128)}', space=vmem, size = 0x12000, scoped, tag = 'internal scratch']
  %s0 = inlined_call_operand.vmem [shape: f32[3,64,128], index: 0, kind: input, shape index: {}]
  %s1 = inlined_call_operand.vmem [shape: f32[128,128], index: 1, kind: input, shape index: {}]
  %s2 = inlined_call_operand.vmem [shape: f32[128,128], index: 2, kind: input, shape index: {}]
  %s3 = inlined_call_operand.vmem [shape: f32[4,128], index: 3, kind: input, shape index: {}]
  %s4 = inlined_call_operand.vmem [shape: f32[64,128], index: 4, kind: output, shape index: {}]
  %s5 = sld [smem:[#allocation0]]
  $region26: #{resnet_block_forward.1} parent=0
    _
  %s7 = ssub.s32 1, %s5
  %s8 = scalar_select 0, %s7, %s5
  // Predicated region
  $region2: #{resnet_block_forward.1} parent=0 // pred_check
    _
  $region3: #{resnet_block_forward.1} parent=0 // pred_check_branch
    %10 = sbr.rel (0) target = $region5
  $region4: #{resnet_block_forward.1} parent=0 // pred_region
    _
  $region5: #{resnet_block_forward.1} parent=0 // pred_fallthru
    _
  // Predicated region
  $region6: #{resnet_block_forward.1} parent=0 // pred_check
    _
  $region7: #{resnet_block_forward.1} parent=0 // pred_check_branch
    %12 = sbr.rel (0) target = $region9
  $region8: #{resnet_block_forward.1} parent=0 // pred_region
    _
  $region9: #{resnet_block_forward.1} parent=0 // pred_fallthru
    _
  // Predicated region
  $region10: #{resnet_block_forward.1} parent=0 // pred_check
    _
  $region11: #{resnet_block_forward.1} parent=0 // pred_check_branch
    %14 = sbr.rel (0) target = $region13
  $region12: #{resnet_block_forward.1} parent=0 // pred_region
    _
  $region13: #{resnet_block_forward.1} parent=0 // pred_fallthru
    _
  // Predicated region
  $region14: #{resnet_block_forward.1} parent=0 // pred_check
    _
  $region15: #{resnet_block_forward.1} parent=0 // pred_check_branch
    %16 = sbr.rel (0) target = $region17
  $region16: #{resnet_block_forward.1} parent=0 // pred_region
    _
  $region17: #{resnet_block_forward.1} parent=0 // pred_fallthru
    _
  %v17 = vld [vmem:[%s3] sm:$0xf]
  %v18 = vld [vmem:[%s0] sm:$0xff]
  %v19 = vld [vmem:[%s0 + $0x8] sm:$0xff]
  %v20 = vld [vmem:[%s0 + $0x10] sm:$0xff]
  %v21 = vld [vmem:[%s0 + $0x18] sm:$0xff]
  %v22 = vld [vmem:[%s0 + $0x20] sm:$0xff]
  %v23 = vld [vmem:[%s0 + $0x28] sm:$0xff]
  %v24 = vld [vmem:[%s0 + $0x30] sm:$0xff]
  %v25 = vld [vmem:[%s0 + $0x38] sm:$0xff]
  %v26 = vld [vmem:[%s0 + $0x40] sm:$0xff]
  %v27 = vld [vmem:[%s0 + $0x48] sm:$0xff]
  %v28 = vld [vmem:[%s0 + $0x50] sm:$0xff]
  %v29 = vld [vmem:[%s0 + $0x58] sm:$0xff]
  %v30 = vld [vmem:[%s0 + $0x60] sm:$0xff]
  %v31 = vld [vmem:[%s0 + $0x68] sm:$0xff]
  %v32 = vld [vmem:[%s0 + $0x70] sm:$0xff]
  %v33 = vld [vmem:[%s0 + $0x78] sm:$0xff]
  %v34 = vld [vmem:[%s0 + $0x80] sm:$0xff]
  %v35 = vld [vmem:[%s0 + $0x88] sm:$0xff]
  %v36 = vld [vmem:[%s0 + $0x90] sm:$0xff]
  %v37 = vld [vmem:[%s0 + $0x98] sm:$0xff]
  %v38 = vld [vmem:[%s0 + $0xa0] sm:$0xff]
  %v39 = vld [vmem:[%s0 + $0xa8] sm:$0xff]
  %v40 = vld [vmem:[%s0 + $0xb0] sm:$0xff]
  %v41 = vld [vmem:[%s0 + $0xb8] sm:$0xff]
  %v42 = vld [vmem:[%s1] sm:$0xff]
  %v43 = vld [vmem:[%s1 + $0x8] sm:$0xff]
  %v44 = vld [vmem:[%s1 + $0x10] sm:$0xff]
  %v45 = vld [vmem:[%s1 + $0x18] sm:$0xff]
  %v46 = vld [vmem:[%s1 + $0x20] sm:$0xff]
  %v47 = vld [vmem:[%s1 + $0x28] sm:$0xff]
  %v48 = vld [vmem:[%s1 + $0x30] sm:$0xff]
  %v49 = vld [vmem:[%s1 + $0x38] sm:$0xff]
  %v50 = vld [vmem:[%s1 + $0x40] sm:$0xff]
  %v51 = vld [vmem:[%s1 + $0x48] sm:$0xff]
  %v52 = vld [vmem:[%s1 + $0x50] sm:$0xff]
  %v53 = vld [vmem:[%s1 + $0x58] sm:$0xff]
  %v54 = vld [vmem:[%s1 + $0x60] sm:$0xff]
  %v55 = vld [vmem:[%s1 + $0x68] sm:$0xff]
  %v56 = vld [vmem:[%s1 + $0x70] sm:$0xff]
  %v57 = vld [vmem:[%s1 + $0x78] sm:$0xff]
  %v58 = vlaneseq
  %v59 = vshrl.u32 %v58, 7
  %v60 = vsub.s32 0, %v59
  %v61 = vrot.slane %v17, %v60
  %62 = vmatprep.subr.mxu0 0.0
  %63 = vmatpush1.msra.mxu0 %v42
  %64 = vmatprep.subr.mxu0 0.0
  %65 = vmatpush1.msra.mxu0 %v43
  %66 = vmatprep.subr.mxu0 0.0
  %67 = vmatpush1.msra.mxu0 %v44
  %68 = vmatprep.subr.mxu0 0.0
  %69 = vmatpush1.msra.mxu0 %v45
  %70 = vmatprep.subr.mxu0 0.0
  %71 = vmatpush1.msra.mxu0 %v46
  %72 = vmatprep.subr.mxu0 0.0
  %73 = vmatpush1.msra.mxu0 %v47
  %74 = vmatprep.subr.mxu0 0.0
  %75 = vmatpush1.msra.mxu0 %v48
  %76 = vmatprep.subr.mxu0 0.0
  %77 = vmatpush1.msra.mxu0 %v49
  %78 = vmatprep.subr.mxu0 0.0
  %79 = vmatpush1.msra.mxu0 %v50
  %80 = vmatprep.subr.mxu0 0.0
  %81 = vmatpush1.msra.mxu0 %v51
  %82 = vmatprep.subr.mxu0 0.0
  %83 = vmatpush1.msra.mxu0 %v52
  %84 = vmatprep.subr.mxu0 0.0
  %85 = vmatpush1.msra.mxu0 %v53
  %86 = vmatprep.subr.mxu0 0.0
  %87 = vmatpush1.msra.mxu0 %v54
  %88 = vmatprep.subr.mxu0 0.0
  %89 = vmatpush1.msra.mxu0 %v55
  %90 = vmatprep.subr.mxu0 0.0
  %91 = vmatpush1.msra.mxu0 %v56
  %92 = vmatprep.subr.mxu0 0.0
  %93 = vmatpush1.msra.mxu0 %v57
  %94 = vmatprep.subr.mxu0 0.0
  %95 = vmatpush1.msra.mxu0 0.0
  %96 = vmatprep.subr.mxu0 0.0
  %97 = vmatpush1.msra.mxu0 0.0
  %98 = vmatprep.subr.mxu0 0.0
  %99 = vmatpush1.msra.mxu0 0.0
  %100 = vmatprep.subr.mxu0 0.0
  %101 = vmatpush1.msra.mxu0 0.0
  %102 = vmatprep.subr.mxu0 0.0
  %103 = vmatpush1.msra.mxu0 0.0
  %104 = vmatprep.subr.mxu0 0.0
  %105 = vmatpush1.msra.mxu0 0.0
  %106 = vmatprep.subr.mxu0 0.0
  %107 = vmatpush1.msra.mxu0 0.0
  %108 = vmatprep.subr.mxu0 0.0
  %109 = vmatpush1.msra.mxu0 0.0
  %110 = vmatprep.subr.mxu0 0.0
  %111 = vmatpush1.msra.mxu0 0.0
  %112 = vmatprep.subr.mxu0 0.0
  %113 = vmatpush1.msra.mxu0 0.0
  %114 = vmatprep.subr.mxu0 0.0
  %115 = vmatpush1.msra.mxu0 0.0
  %116 = vmatprep.subr.mxu0 0.0
  %117 = vmatpush1.msra.mxu0 0.0
  %118 = vmatprep.subr.mxu0 0.0
  %119 = vmatpush1.msra.mxu0 0.0
  %120 = vmatprep.subr.mxu0 0.0
  %121 = vmatpush1.msra.mxu0 0.0
  %122 = vmatprep.subr.mxu0 0.0
  %123 = vmatpush1.msra.mxu0 0.0
  %124 = vmatprep.subr.mxu0 0.0
  %125 = vmatpush1.msra.mxu0 0.0
  %126 = vmatprep.mubr.f32.mxu0 0.0
  %127 = vmatmul.mubr.f32.gmra.mrb[0].mxu0 %v18
  %v128 = vpop.f32.mrb[0].mxu0
  %v129 = vadd.f32 %v61, %v128
  %v130 = vpop.f32.mrb[0].mxu0
  %131 = vmatprep.mubr.f32.mxu0 0.0
  %132 = vmatmul.mubr.f32.gmra.mrb[0].mxu0 %v19
  %v133 = vpop.f32.mrb[0].mxu0
  %v134 = vadd.f32 %v61, %v133
  %v135 = vpop.f32.mrb[0].mxu0
  %136 = vmatprep.mubr.f32.mxu0 0.0
  %137 = vmatmul.mubr.f32.gmra.mrb[0].mxu0 %v20
  %v138 = vpop.f32.mrb[0].mxu0
  %v139 = vadd.f32 %v61, %v138
  %v140 = vpop.f32.mrb[0].mxu0
  %141 = vmatprep.mubr.f32.mxu0 0.0
  %142 = vmatmul.mubr.f32.gmra.mrb[0].mxu0 %v21
  %v143 = vpop.f32.mrb[0].mxu0
  %v144 = vadd.f32 %v61, %v143
  %v145 = vpop.f32.mrb[0].mxu0
  %146 = vmatprep.mubr.f32.mxu0 0.0
  %147 = vmatmul.mubr.f32.gmra.mrb[0].mxu0 %v22
  %v148 = vpop.f32.mrb[0].mxu0
  %v149 = vadd.f32 %v61, %v148
  %v150 = vpop.f32.mrb[0].mxu0
  %151 = vmatprep.mubr.f32.mxu0 0.0
  %152 = vmatmul.mubr.f32.gmra.mrb[0].mxu0 %v23
  %v153 = vpop.f32.mrb[0].mxu0
  %v154 = vadd.f32 %v61, %v153
  %v155 = vpop.f32.mrb[0].mxu0
  %156 = vmatprep.mubr.f32.mxu0 0.0
  %157 = vmatmul.mubr.f32.gmra.mrb[0].mxu0 %v24
  %v158 = vpop.f32.mrb[0].mxu0
  %v159 = vadd.f32 %v61, %v158
  %v160 = vpop.f32.mrb[0].mxu0
  %161 = vmatprep.mubr.f32.mxu0 0.0
  %162 = vmatmul.mubr.f32.gmra.mrb[0].mxu0 %v25
  %v163 = vpop.f32.mrb[0].mxu0
  %v164 = vadd.f32 %v61, %v163
  %v165 = vpop.f32.mrb[0].mxu0
  %166 = vmatprep.mubr.f32.mxu0 0.0
  %167 = vmatmul.mubr.f32.gmra.mrb[0].mxu0 %v26
  %v168 = vpop.f32.mrb[0].mxu0
  %v169 = vadd.f32 %v61, %v168
  %v170 = vpop.f32.mrb[0].mxu0
  %171 = vmatprep.mubr.f32.mxu0 0.0
  %172 = vmatmul.mubr.f32.gmra.mrb[0].mxu0 %v27
  %v173 = vpop.f32.mrb[0].mxu0
  %v174 = vadd.f32 %v61, %v173
  %v175 = vpop.f32.mrb[0].mxu0
  %176 = vmatprep.mubr.f32.mxu0 0.0
  %177 = vmatmul.mubr.f32.gmra.mrb[0].mxu0 %v28
  %v178 = vpop.f32.mrb[0].mxu0
  %v179 = vadd.f32 %v61, %v178
  %v180 = vpop.f32.mrb[0].mxu0
  %181 = vmatprep.mubr.f32.mxu0 0.0
  %182 = vmatmul.mubr.f32.gmra.mrb[0].mxu0 %v29
  %v183 = vpop.f32.mrb[0].mxu0
  %v184 = vadd.f32 %v61, %v183
  %v185 = vpop.f32.mrb[0].mxu0
  %186 = vmatprep.mubr.f32.mxu0 0.0
  %187 = vmatmul.mubr.f32.gmra.mrb[0].mxu0 %v30
  %v188 = vpop.f32.mrb[0].mxu0
  %v189 = vadd.f32 %v61, %v188
  %v190 = vpop.f32.mrb[0].mxu0
  %191 = vmatprep.mubr.f32.mxu0 0.0
  %192 = vmatmul.mubr.f32.gmra.mrb[0].mxu0 %v31
  %v193 = vpop.f32.mrb[0].mxu0
  %v194 = vadd.f32 %v61, %v193
  %v195 = vpop.f32.mrb[0].mxu0
  %196 = vmatprep.mubr.f32.mxu0 0.0
  %197 = vmatmul.mubr.f32.gmra.mrb[0].mxu0 %v32
  %v198 = vpop.f32.mrb[0].mxu0
  %v199 = vadd.f32 %v61, %v198
  %v200 = vpop.f32.mrb[0].mxu0
  %201 = vmatprep.mubr.f32.mxu0 0.0
  %202 = vmatmul.mubr.f32.gmra.mrb[0].mxu0 %v33
  %v203 = vpop.f32.mrb[0].mxu0
  %v204 = vadd.f32 %v61, %v203
  %v205 = vpop.f32.mrb[0].mxu0
  %206 = vmatprep.mubr.f32.mxu0 0.0
  %207 = vmatmul.mubr.f32.gmra.mrb[0].mxu0 %v34
  %v208 = vpop.f32.mrb[0].mxu0
  %v209 = vadd.f32 %v61, %v208
  %v210 = vpop.f32.mrb[0].mxu0
  %211 = vmatprep.mubr.f32.mxu0 0.0
  %212 = vmatmul.mubr.f32.gmra.mrb[0].mxu0 %v35
  %v213 = vpop.f32.mrb[0].mxu0
  %v214 = vadd.f32 %v61, %v213
  %v215 = vpop.f32.mrb[0].mxu0
  %216 = vmatprep.mubr.f32.mxu0 0.0
  %217 = vmatmul.mubr.f32.gmra.mrb[0].mxu0 %v36
  %v218 = vpop.f32.mrb[0].mxu0
  %v219 = vadd.f32 %v61, %v218
  %v220 = vpop.f32.mrb[0].mxu0
  %221 = vmatprep.mubr.f32.mxu0 0.0
  %222 = vmatmul.mubr.f32.gmra.mrb[0].mxu0 %v37
  %v223 = vpop.f32.mrb[0].mxu0
  %v224 = vadd.f32 %v61, %v223
  %v225 = vpop.f32.mrb[0].mxu0
  %226 = vmatprep.mubr.f32.mxu0 0.0
  %227 = vmatmul.mubr.f32.gmra.mrb[0].mxu0 %v38
  %v228 = vpop.f32.mrb[0].mxu0
  %v229 = vadd.f32 %v61, %v228
  %v230 = vpop.f32.mrb[0].mxu0
  %231 = vmatprep.mubr.f32.mxu0 0.0
  %232 = vmatmul.mubr.f32.gmra.mrb[0].mxu0 %v39
  %v233 = vpop.f32.mrb[0].mxu0
  %v234 = vadd.f32 %v61, %v233
  %v235 = vpop.f32.mrb[0].mxu0
  %236 = vmatprep.mubr.f32.mxu0 0.0
  %237 = vmatmul.mubr.f32.gmra.mrb[0].mxu0 %v40
  %v238 = vpop.f32.mrb[0].mxu0
  %v239 = vadd.f32 %v61, %v238
  %v240 = vpop.f32.mrb[0].mxu0
  %241 = vmatprep.mubr.f32.mxu0 0.0
  %242 = vmatmul.mubr.f32.gmra.mrb[0].mxu0 %v41
  %v243 = vpop.f32.mrb[0].mxu0
  %v244 = vadd.f32 %v61, %v243
  %v245 = vpop.f32.mrb[0].mxu0
  %246 = vdwg.mxu0
  %vm247 = vcmp.gt.f32.partialorder %v129, 0.0
  %vm248 = vcmp.gt.f32.partialorder %v134, 0.0
  %vm249 = vcmp.gt.f32.partialorder %v139, 0.0
  %vm250 = vcmp.gt.f32.partialorder %v144, 0.0
  %vm251 = vcmp.gt.f32.partialorder %v149, 0.0
  %vm252 = vcmp.gt.f32.partialorder %v154, 0.0
  %vm253 = vcmp.gt.f32.partialorder %v159, 0.0
  %vm254 = vcmp.gt.f32.partialorder %v164, 0.0
  %vm255 = vcmp.gt.f32.partialorder %v169, 0.0
  %vm256 = vcmp.gt.f32.partialorder %v174, 0.0
  %vm257 = vcmp.gt.f32.partialorder %v179, 0.0
  %vm258 = vcmp.gt.f32.partialorder %v184, 0.0
  %vm259 = vcmp.gt.f32.partialorder %v189, 0.0
  %vm260 = vcmp.gt.f32.partialorder %v194, 0.0
  %vm261 = vcmp.gt.f32.partialorder %v199, 0.0
  %vm262 = vcmp.gt.f32.partialorder %v204, 0.0
  %vm263 = vcmp.gt.f32.partialorder %v209, 0.0
  %vm264 = vcmp.gt.f32.partialorder %v214, 0.0
  %vm265 = vcmp.gt.f32.partialorder %v219, 0.0
  %vm266 = vcmp.gt.f32.partialorder %v224, 0.0
  %vm267 = vcmp.gt.f32.partialorder %v229, 0.0
  %vm268 = vcmp.gt.f32.partialorder %v234, 0.0
  %vm269 = vcmp.gt.f32.partialorder %v239, 0.0
  %vm270 = vcmp.gt.f32.partialorder %v244, 0.0
  %v271 = vlaneseq
  %v272 = vshrl.u32 %v271, 7
  %v273 = vsub.s32 2, %v272
  %v274 = vrot.slane %v17, %v273
  %v275 = vmul.f32 %v274, %v129
  %v276 = vmul.f32 %v274, %v134
  %v277 = vmul.f32 %v274, %v139
  %v278 = vmul.f32 %v274, %v144
  %v279 = vmul.f32 %v274, %v149
  %v280 = vmul.f32 %v274, %v154
  %v281 = vmul.f32 %v274, %v159
  %v282 = vmul.f32 %v274, %v164
  %v283 = vmul.f32 %v274, %v169
  %v284 = vmul.f32 %v274, %v174
  %v285 = vmul.f32 %v274, %v179
  %v286 = vmul.f32 %v274, %v184
  %v287 = vmul.f32 %v274, %v189
  %v288 = vmul.f32 %v274, %v194
  %v289 = vmul.f32 %v274, %v199
  %v290 = vmul.f32 %v274, %v204
  %v291 = vmul.f32 %v274, %v209
  %v292 = vmul.f32 %v274, %v214
  %v293 = vmul.f32 %v274, %v219
  %v294 = vmul.f32 %v274, %v224
  %v295 = vmul.f32 %v274, %v229
  %v296 = vmul.f32 %v274, %v234
  %v297 = vmul.f32 %v274, %v239
  %v298 = vmul.f32 %v274, %v244
  %v299 = vsel %vm247, %v129, %v275
  %v300 = vsel %vm248, %v134, %v276
  %v301 = vsel %vm249, %v139, %v277
  %v302 = vsel %vm250, %v144, %v278
  %v303 = vsel %vm251, %v149, %v279
  %v304 = vsel %vm252, %v154, %v280
  %v305 = vsel %vm253, %v159, %v281
  %v306 = vsel %vm254, %v164, %v282
  %v307 = vsel %vm255, %v169, %v283
  %v308 = vsel %vm256, %v174, %v284
  %v309 = vsel %vm257, %v179, %v285
  %v310 = vsel %vm258, %v184, %v286
  %v311 = vsel %vm259, %v189, %v287
  %v312 = vsel %vm260, %v194, %v288
  %v313 = vsel %vm261, %v199, %v289
  %v314 = vsel %vm262, %v204, %v290
  %v315 = vsel %vm263, %v209, %v291
  %v316 = vsel %vm264, %v214, %v292
  %v317 = vsel %vm265, %v219, %v293
  %v318 = vsel %vm266, %v224, %v294
  %v319 = vsel %vm267, %v229, %v295
  %v320 = vsel %vm268, %v234, %v296
  %v321 = vsel %vm269, %v239, %v297
  %v322 = vsel %vm270, %v244, %v298
  %v323 = vld [vmem:[%s2] sm:$0xff]
  %v324 = vld [vmem:[%s2 + $0x8] sm:$0xff]
  %v325 = vld [vmem:[%s2 + $0x10] sm:$0xff]
  %v326 = vld [vmem:[%s2 + $0x18] sm:$0xff]
  %v327 = vld [vmem:[%s2 + $0x20] sm:$0xff]
  %v328 = vld [vmem:[%s2 + $0x28] sm:$0xff]
  %v329 = vld [vmem:[%s2 + $0x30] sm:$0xff]
  %v330 = vld [vmem:[%s2 + $0x38] sm:$0xff]
  %v331 = vld [vmem:[%s2 + $0x40] sm:$0xff]
  %v332 = vld [vmem:[%s2 + $0x48] sm:$0xff]
  %v333 = vld [vmem:[%s2 + $0x50] sm:$0xff]
  %v334 = vld [vmem:[%s2 + $0x58] sm:$0xff]
  %v335 = vld [vmem:[%s2 + $0x60] sm:$0xff]
  %v336 = vld [vmem:[%s2 + $0x68] sm:$0xff]
  %v337 = vld [vmem:[%s2 + $0x70] sm:$0xff]
  %v338 = vld [vmem:[%s2 + $0x78] sm:$0xff]
  %v339 = vlaneseq
  %v340 = vshrl.u32 %v339, 7
  %v341 = vsub.s32 1, %v340
  %v342 = vrot.slane %v17, %v341
  %343 = vmatprep.subr.mxu0 0.0
  %344 = vmatpush1.msra.mxu0 %v323
  %345 = vmatprep.subr.mxu0 0.0
  %346 = vmatpush1.msra.mxu0 %v324
  %347 = vmatprep.subr.mxu0 0.0
  %348 = vmatpush1.msra.mxu0 %v325
  %349 = vmatprep.subr.mxu0 0.0
  %350 = vmatpush1.msra.mxu0 %v326
  %351 = vmatprep.subr.mxu0 0.0
  %352 = vmatpush1.msra.mxu0 %v327
  %353 = vmatprep.subr.mxu0 0.0
  %354 = vmatpush1.msra.mxu0 %v328
  %355 = vmatprep.subr.mxu0 0.0
  %356 = vmatpush1.msra.mxu0 %v329
  %357 = vmatprep.subr.mxu0 0.0
  %358 = vmatpush1.msra.mxu0 %v330
  %359 = vmatprep.subr.mxu0 0.0
  %360 = vmatpush1.msra.mxu0 %v331
  %361 = vmatprep.subr.mxu0 0.0
  %362 = vmatpush1.msra.mxu0 %v332
  %363 = vmatprep.subr.mxu0 0.0
  %364 = vmatpush1.msra.mxu0 %v333
  %365 = vmatprep.subr.mxu0 0.0
  %366 = vmatpush1.msra.mxu0 %v334
  %367 = vmatprep.subr.mxu0 0.0
  %368 = vmatpush1.msra.mxu0 %v335
  %369 = vmatprep.subr.mxu0 0.0
  %370 = vmatpush1.msra.mxu0 %v336
  %371 = vmatprep.subr.mxu0 0.0
  %372 = vmatpush1.msra.mxu0 %v337
  %373 = vmatprep.subr.mxu0 0.0
  %374 = vmatpush1.msra.mxu0 %v338
  %375 = vmatprep.subr.mxu0 0.0
  %376 = vmatpush1.msra.mxu0 0.0
  %377 = vmatprep.subr.mxu0 0.0
  %378 = vmatpush1.msra.mxu0 0.0
  %379 = vmatprep.subr.mxu0 0.0
  %380 = vmatpush1.msra.mxu0 0.0
  %381 = vmatprep.subr.mxu0 0.0
  %382 = vmatpush1.msra.mxu0 0.0
  %383 = vmatprep.subr.mxu0 0.0
  %384 = vmatpush1.msra.mxu0 0.0
  %385 = vmatprep.subr.mxu0 0.0
  %386 = vmatpush1.msra.mxu0 0.0
  %387 = vmatprep.subr.mxu0 0.0
  %388 = vmatpush1.msra.mxu0 0.0
  %389 = vmatprep.subr.mxu0 0.0
  %390 = vmatpush1.msra.mxu0 0.0
  %391 = vmatprep.subr.mxu0 0.0
  %392 = vmatpush1.msra.mxu0 0.0
  %393 = vmatprep.subr.mxu0 0.0
  %394 = vmatpush1.msra.mxu0 0.0
  %395 = vmatprep.subr.mxu0 0.0
  %396 = vmatpush1.msra.mxu0 0.0
  %397 = vmatprep.subr.mxu0 0.0
  %398 = vmatpush1.msra.mxu0 0.0
  %399 = vmatprep.subr.mxu0 0.0
  %400 = vmatpush1.msra.mxu0 0.0
  %401 = vmatprep.subr.mxu0 0.0
  %402 = vmatpush1.msra.mxu0 0.0
  %403 = vmatprep.subr.mxu0 0.0
  %404 = vmatpush1.msra.mxu0 0.0
  %405 = vmatprep.subr.mxu0 0.0
  %406 = vmatpush1.msra.mxu0 0.0
  %407 = vmatprep.mubr.f32.mxu0 0.0
  %408 = vmatmul.mubr.f32.gmra.mrb[0].mxu0 %v299
  %v409 = vpop.f32.mrb[0].mxu0
  %v410 = vadd.f32 %v342, %v409
  %v411 = vpop.f32.mrb[0].mxu0
  %412 = vmatprep.mubr.f32.mxu0 0.0
  %413 = vmatmul.mubr.f32.gmra.mrb[0].mxu0 %v300
  %v414 = vpop.f32.mrb[0].mxu0
  %v415 = vadd.f32 %v342, %v414
  %v416 = vpop.f32.mrb[0].mxu0
  %417 = vmatprep.mubr.f32.mxu0 0.0
  %418 = vmatmul.mubr.f32.gmra.mrb[0].mxu0 %v301
  %v419 = vpop.f32.mrb[0].mxu0
  %v420 = vadd.f32 %v342, %v419
  %v421 = vpop.f32.mrb[0].mxu0
  %422 = vmatprep.mubr.f32.mxu0 0.0
  %423 = vmatmul.mubr.f32.gmra.mrb[0].mxu0 %v302
  %v424 = vpop.f32.mrb[0].mxu0
  %v425 = vadd.f32 %v342, %v424
  %v426 = vpop.f32.mrb[0].mxu0
  %427 = vmatprep.mubr.f32.mxu0 0.0
  %428 = vmatmul.mubr.f32.gmra.mrb[0].mxu0 %v303
  %v429 = vpop.f32.mrb[0].mxu0
  %v430 = vadd.f32 %v342, %v429
  %v431 = vpop.f32.mrb[0].mxu0
  %432 = vmatprep.mubr.f32.mxu0 0.0
  %433 = vmatmul.mubr.f32.gmra.mrb[0].mxu0 %v304
  %v434 = vpop.f32.mrb[0].mxu0
  %v435 = vadd.f32 %v342, %v434
  %v436 = vpop.f32.mrb[0].mxu0
  %437 = vmatprep.mubr.f32.mxu0 0.0
  %438 = vmatmul.mubr.f32.gmra.mrb[0].mxu0 %v305
  %v439 = vpop.f32.mrb[0].mxu0
  %v440 = vadd.f32 %v342, %v439
  %v441 = vpop.f32.mrb[0].mxu0
  %442 = vmatprep.mubr.f32.mxu0 0.0
  %443 = vmatmul.mubr.f32.gmra.mrb[0].mxu0 %v306
  %v444 = vpop.f32.mrb[0].mxu0
  %v445 = vadd.f32 %v342, %v444
  %v446 = vpop.f32.mrb[0].mxu0
  %447 = vmatprep.mubr.f32.mxu0 0.0
  %448 = vmatmul.mubr.f32.gmra.mrb[0].mxu0 %v307
  %v449 = vpop.f32.mrb[0].mxu0
  %v450 = vadd.f32 %v342, %v449
  %v451 = vpop.f32.mrb[0].mxu0
  %452 = vmatprep.mubr.f32.mxu0 0.0
  %453 = vmatmul.mubr.f32.gmra.mrb[0].mxu0 %v308
  %v454 = vpop.f32.mrb[0].mxu0
  %v455 = vadd.f32 %v342, %v454
  %v456 = vpop.f32.mrb[0].mxu0
  %457 = vmatprep.mubr.f32.mxu0 0.0
  %458 = vmatmul.mubr.f32.gmra.mrb[0].mxu0 %v309
  %v459 = vpop.f32.mrb[0].mxu0
  %v460 = vadd.f32 %v342, %v459
  %v461 = vpop.f32.mrb[0].mxu0
  %462 = vmatprep.mubr.f32.mxu0 0.0
  %463 = vmatmul.mubr.f32.gmra.mrb[0].mxu0 %v310
  %v464 = vpop.f32.mrb[0].mxu0
  %v465 = vadd.f32 %v342, %v464
  %v466 = vpop.f32.mrb[0].mxu0
  %467 = vmatprep.mubr.f32.mxu0 0.0
  %468 = vmatmul.mubr.f32.gmra.mrb[0].mxu0 %v311
  %v469 = vpop.f32.mrb[0].mxu0
  %v470 = vadd.f32 %v342, %v469
  %v471 = vpop.f32.mrb[0].mxu0
  %472 = vmatprep.mubr.f32.mxu0 0.0
  %473 = vmatmul.mubr.f32.gmra.mrb[0].mxu0 %v312
  %v474 = vpop.f32.mrb[0].mxu0
  %v475 = vadd.f32 %v342, %v474
  %v476 = vpop.f32.mrb[0].mxu0
  %477 = vmatprep.mubr.f32.mxu0 0.0
  %478 = vmatmul.mubr.f32.gmra.mrb[0].mxu0 %v313
  %v479 = vpop.f32.mrb[0].mxu0
  %v480 = vadd.f32 %v342, %v479
  %v481 = vpop.f32.mrb[0].mxu0
  %482 = vmatprep.mubr.f32.mxu0 0.0
  %483 = vmatmul.mubr.f32.gmra.mrb[0].mxu0 %v314
  %v484 = vpop.f32.mrb[0].mxu0
  %v485 = vadd.f32 %v342, %v484
  %v486 = vpop.f32.mrb[0].mxu0
  %487 = vmatprep.mubr.f32.mxu0 0.0
  %488 = vmatmul.mubr.f32.gmra.mrb[0].mxu0 %v315
  %v489 = vpop.f32.mrb[0].mxu0
  %v490 = vadd.f32 %v342, %v489
  %v491 = vpop.f32.mrb[0].mxu0
  %492 = vmatprep.mubr.f32.mxu0 0.0
  %493 = vmatmul.mubr.f32.gmra.mrb[0].mxu0 %v316
  %v494 = vpop.f32.mrb[0].mxu0
  %v495 = vadd.f32 %v342, %v494
  %v496 = vpop.f32.mrb[0].mxu0
  %497 = vmatprep.mubr.f32.mxu0 0.0
  %498 = vmatmul.mubr.f32.gmra.mrb[0].mxu0 %v317
  %v499 = vpop.f32.mrb[0].mxu0
  %v500 = vadd.f32 %v342, %v499
  %v501 = vpop.f32.mrb[0].mxu0
  %502 = vmatprep.mubr.f32.mxu0 0.0
  %503 = vmatmul.mubr.f32.gmra.mrb[0].mxu0 %v318
  %v504 = vpop.f32.mrb[0].mxu0
  %v505 = vadd.f32 %v342, %v504
  %v506 = vpop.f32.mrb[0].mxu0
  %507 = vmatprep.mubr.f32.mxu0 0.0
  %508 = vmatmul.mubr.f32.gmra.mrb[0].mxu0 %v319
  %v509 = vpop.f32.mrb[0].mxu0
  %v510 = vadd.f32 %v342, %v509
  %v511 = vpop.f32.mrb[0].mxu0
  %512 = vmatprep.mubr.f32.mxu0 0.0
  %513 = vmatmul.mubr.f32.gmra.mrb[0].mxu0 %v320
  %v514 = vpop.f32.mrb[0].mxu0
  %v515 = vadd.f32 %v342, %v514
  %v516 = vpop.f32.mrb[0].mxu0
  %517 = vmatprep.mubr.f32.mxu0 0.0
  %518 = vmatmul.mubr.f32.gmra.mrb[0].mxu0 %v321
  %v519 = vpop.f32.mrb[0].mxu0
  %v520 = vadd.f32 %v342, %v519
  %v521 = vpop.f32.mrb[0].mxu0
  %522 = vmatprep.mubr.f32.mxu0 0.0
  %523 = vmatmul.mubr.f32.gmra.mrb[0].mxu0 %v322
  %v524 = vpop.f32.mrb[0].mxu0
  %v525 = vadd.f32 %v342, %v524
  %v526 = vpop.f32.mrb[0].mxu0
  %527 = vdwg.mxu0
  %v528 = vadd.f32 %v410, %v18
  %v529 = vadd.f32 %v415, %v19
  %v530 = vadd.f32 %v420, %v20
  %v531 = vadd.f32 %v425, %v21
  %v532 = vadd.f32 %v430, %v22
  %v533 = vadd.f32 %v435, %v23
  %v534 = vadd.f32 %v440, %v24
  %v535 = vadd.f32 %v445, %v25
  %v536 = vadd.f32 %v450, %v26
  %v537 = vadd.f32 %v455, %v27
  %v538 = vadd.f32 %v460, %v28
  %v539 = vadd.f32 %v465, %v29
  %v540 = vadd.f32 %v470, %v30
  %v541 = vadd.f32 %v475, %v31
  %v542 = vadd.f32 %v480, %v32
  %v543 = vadd.f32 %v485, %v33
  %v544 = vadd.f32 %v490, %v34
  %v545 = vadd.f32 %v495, %v35
  %v546 = vadd.f32 %v500, %v36
  %v547 = vadd.f32 %v505, %v37
  %v548 = vadd.f32 %v510, %v38
  %v549 = vadd.f32 %v515, %v39
  %v550 = vadd.f32 %v520, %v40
  %v551 = vadd.f32 %v525, %v41
  %vm552 = vcmp.gt.f32.partialorder %v528, 0.0
  %vm553 = vcmp.gt.f32.partialorder %v529, 0.0
  %vm554 = vcmp.gt.f32.partialorder %v530, 0.0
  %vm555 = vcmp.gt.f32.partialorder %v531, 0.0
  %vm556 = vcmp.gt.f32.partialorder %v532, 0.0
  %vm557 = vcmp.gt.f32.partialorder %v533, 0.0
  %vm558 = vcmp.gt.f32.partialorder %v534, 0.0
  %vm559 = vcmp.gt.f32.partialorder %v535, 0.0
  %vm560 = vcmp.gt.f32.partialorder %v536, 0.0
  %vm561 = vcmp.gt.f32.partialorder %v537, 0.0
  %vm562 = vcmp.gt.f32.partialorder %v538, 0.0
  %vm563 = vcmp.gt.f32.partialorder %v539, 0.0
  %vm564 = vcmp.gt.f32.partialorder %v540, 0.0
  %vm565 = vcmp.gt.f32.partialorder %v541, 0.0
  %vm566 = vcmp.gt.f32.partialorder %v542, 0.0
  %vm567 = vcmp.gt.f32.partialorder %v543, 0.0
  %vm568 = vcmp.gt.f32.partialorder %v544, 0.0
  %vm569 = vcmp.gt.f32.partialorder %v545, 0.0
  %vm570 = vcmp.gt.f32.partialorder %v546, 0.0
  %vm571 = vcmp.gt.f32.partialorder %v547, 0.0
  %vm572 = vcmp.gt.f32.partialorder %v548, 0.0
  %vm573 = vcmp.gt.f32.partialorder %v549, 0.0
  %vm574 = vcmp.gt.f32.partialorder %v550, 0.0
  %vm575 = vcmp.gt.f32.partialorder %v551, 0.0
  %v576 = vlaneseq
  %v577 = vshrl.u32 %v576, 7
  %v578 = vsub.s32 3, %v577
  %v579 = vrot.slane %v17, %v578
  %v580 = vmul.f32 %v579, %v528
  %v581 = vmul.f32 %v579, %v529
  %v582 = vmul.f32 %v579, %v530
  %v583 = vmul.f32 %v579, %v531
  %v584 = vmul.f32 %v579, %v532
  %v585 = vmul.f32 %v579, %v533
  %v586 = vmul.f32 %v579, %v534
  %v587 = vmul.f32 %v579, %v535
  %v588 = vmul.f32 %v579, %v536
  %v589 = vmul.f32 %v579, %v537
  %v590 = vmul.f32 %v579, %v538
  %v591 = vmul.f32 %v579, %v539
  %v592 = vmul.f32 %v579, %v540
  %v593 = vmul.f32 %v579, %v541
  %v594 = vmul.f32 %v579, %v542
  %v595 = vmul.f32 %v579, %v543
  %v596 = vmul.f32 %v579, %v544
  %v597 = vmul.f32 %v579, %v545
  %v598 = vmul.f32 %v579, %v546
  %v599 = vmul.f32 %v579, %v547
  %v600 = vmul.f32 %v579, %v548
  %v601 = vmul.f32 %v579, %v549
  %v602 = vmul.f32 %v579, %v550
  %v603 = vmul.f32 %v579, %v551
  %v604 = vsel %vm552, %v528, %v580
  %v605 = vsel %vm553, %v529, %v581
  %v606 = vsel %vm554, %v530, %v582
  %v607 = vsel %vm555, %v531, %v583
  %v608 = vsel %vm556, %v532, %v584
  %v609 = vsel %vm557, %v533, %v585
  %v610 = vsel %vm558, %v534, %v586
  %v611 = vsel %vm559, %v535, %v587
  %v612 = vsel %vm560, %v536, %v588
  %v613 = vsel %vm561, %v537, %v589
  %v614 = vsel %vm562, %v538, %v590
  %v615 = vsel %vm563, %v539, %v591
  %v616 = vsel %vm564, %v540, %v592
  %v617 = vsel %vm565, %v541, %v593
  %v618 = vsel %vm566, %v542, %v594
  %v619 = vsel %vm567, %v543, %v595
  %v620 = vsel %vm568, %v544, %v596
  %v621 = vsel %vm569, %v545, %v597
  %v622 = vsel %vm570, %v546, %v598
  %v623 = vsel %vm571, %v547, %v599
  %v624 = vsel %vm572, %v548, %v600
  %v625 = vsel %vm573, %v549, %v601
  %v626 = vsel %vm574, %v550, %v602
  %v627 = vsel %vm575, %v551, %v603
  %v628 = vmax.f32 %v604, %v612
  %v629 = vmax.f32 %v605, %v613
  %v630 = vmax.f32 %v606, %v614
  %v631 = vmax.f32 %v607, %v615
  %v632 = vmax.f32 %v608, %v616
  %v633 = vmax.f32 %v609, %v617
  %v634 = vmax.f32 %v610, %v618
  %v635 = vmax.f32 %v611, %v619
  %v636 = vmax.f32 %v628, %v620
  %v637 = vmax.f32 %v629, %v621
  %v638 = vmax.f32 %v630, %v622
  %v639 = vmax.f32 %v631, %v623
  %v640 = vmax.f32 %v632, %v624
  %v641 = vmax.f32 %v633, %v625
  %v642 = vmax.f32 %v634, %v626
  %v643 = vmax.f32 %v635, %v627
  %644 = vst [vmem:[%s4] sm:$0xff] %v636
  %645 = vst [vmem:[%s4 + $0x8] sm:$0xff] %v637
  %646 = vst [vmem:[%s4 + $0x10] sm:$0xff] %v638
  %647 = vst [vmem:[%s4 + $0x18] sm:$0xff] %v639
  %648 = vst [vmem:[%s4 + $0x20] sm:$0xff] %v640
  %649 = vst [vmem:[%s4 + $0x28] sm:$0xff] %v641
  %650 = vst [vmem:[%s4 + $0x30] sm:$0xff] %v642
  %651 = vst [vmem:[%s4 + $0x38] sm:$0xff] %v643
  // Predicated region
  $region18: #{resnet_block_forward.1} parent=0 // pred_check
    _
  $region19: #{resnet_block_forward.1} parent=0 // pred_check_branch
    %653 = sbr.rel (0) target = $region21
  $region20: #{resnet_block_forward.1} parent=0 // pred_region
    _
  $region21: #{resnet_block_forward.1} parent=0 // pred_fallthru
    _
  // Predicated region
  $region22: #{resnet_block_forward.1} parent=0 // pred_check
    _
  $region23: #{resnet_block_forward.1} parent=0 // pred_check_branch
    %655 = sbr.rel (0) target = $region25
  $region24: #{resnet_block_forward.1} parent=0 // pred_region
    _
  $region25: #{resnet_block_forward.1} parent=0 // pred_fallthru
    _

</llo_original>
